<compile_context>
chip_gen: v7x
topology: tpu7x:2x2x1
jax: 0.10.0
libtpu: 0.0.40
codegen_flags: <defaults>
</compile_context>

<pallas_src>
import functools

import jax
import jax.numpy as jnp
from jax.experimental import pallas as pl
from jax.experimental.pallas import tpu as pltpu


# ---------------------------------------------------------------------------
# Non-recurrent input projection: gates_x = x2d @ W_i (Din, 3H) + b_i (1, 3H)
# ---------------------------------------------------------------------------
def _input_proj_kernel(x_ref, w_ref, b_ref, out_ref):
    out_ref[...] = (
        jnp.dot(x_ref[...], w_ref[...], preferred_element_type=jnp.float32)
        + b_ref[...]
    ).astype(out_ref.dtype)


def input_projection(x2d, w_i, b_i, *, row_block=256):
    """x2d: (M, Din), w_i: (Din, 3H), b_i: (1, 3H) -> (M, 3H). M must be a multiple of 8."""
    M, Din = x2d.shape
    G = w_i.shape[1]
    rt = min(row_block, M)
    m_pad = pl.cdiv(M, rt) * rt
    if m_pad != M:
        x2d = jnp.pad(x2d, ((0, m_pad - M), (0, 0)))

    out = pl.pallas_call(
        _input_proj_kernel,
        out_shape=jax.ShapeDtypeStruct((m_pad, G), jnp.float32),
        grid_spec=pltpu.PrefetchScalarGridSpec(
            num_scalar_prefetch=0,
            grid=(m_pad // rt,),
            in_specs=[
                pl.BlockSpec((rt, Din), lambda i: (i, 0)),
                pl.BlockSpec((Din, G), lambda i: (0, 0)),
                pl.BlockSpec((1, G), lambda i: (0, 0)),
            ],
            out_specs=pl.BlockSpec((rt, G), lambda i: (i, 0)),
        ),
        compiler_params=pltpu.CompilerParams(
            dimension_semantics=("parallel",),
        ),
    )(x2d, w_i, b_i)
    return out[:M]


# ---------------------------------------------------------------------------
# Recurrent kernel: one grid step = one chunk of T timesteps.
# Only the h-dependent work (one (B,H)x(H,3H) dot + gate math) runs per timestep.
# ---------------------------------------------------------------------------
def _gru_recurrent_kernel(gates_x_ref,   # (T, B, 3H)  precomputed x_t @ W_ih^T + b_ih
                          w_h_ref,       # (H, 3H)     fused [r|z|n] hidden weights
                          b_h_ref,       # (1, 3H)
                          out_ref,       # (T, B, H)
                          h_ref,         # VMEM scratch (B, H) -- recurrent carry
                          *, hidden_dim, seq_chunk, unroll):
    H = hidden_dim

    @pl.when(pl.program_id(0) == 0)
    def _():
        h_ref[...] = jnp.zeros_like(h_ref)

    w_h = w_h_ref[...]   # resident for the whole chunk
    b_h = b_h_ref[...]

    def step(t, h):
        gx = gates_x_ref[t]                                                  # (B, 3H)
        gh = jnp.dot(h, w_h, preferred_element_type=jnp.float32) + b_h       # (B, 3H)
        # PyTorch GRU cell (gate order r, z, n):
        r = jax.nn.sigmoid(gx[:, :H] + gh[:, :H])
        z = jax.nn.sigmoid(gx[:, H:2 * H] + gh[:, H:2 * H])
        n = jnp.tanh(gx[:, 2 * H:] + r * gh[:, 2 * H:])
        h_new = (1.0 - z) * n + z * h
        out_ref[t] = h_new.astype(out_ref.dtype)
        return h_new

    h_final = jax.lax.fori_loop(0, seq_chunk, step, h_ref[...], unroll=unroll)
    h_ref[...] = h_final


def gru_layer_pallas(x, w_ih, w_hh, b_ih, b_hh, *, seq_chunk=8):
    """One GRU layer over the full sequence.

    x:    (S, B, Din) float32, B a multiple of 8
    w_ih: (3H, Din), w_hh: (3H, H), b_ih/b_hh: (3H,)  -- PyTorch layout, gates [r, z, n]
    returns (S, B, H) float32
    """
    S, B, Din = x.shape
    H = w_hh.shape[1]
    G = 3 * H

    T = min(seq_chunk, S)
    s_pad = pl.cdiv(S, T) * T
    if s_pad != S:
        x = jnp.pad(x, ((0, s_pad - S), (0, 0), (0, 0)))

    # Hoisted input projection: one big (S*B, Din) x (Din, 3H) matmul for all timesteps.
    gates_x = input_projection(
        x.reshape(s_pad * B, Din), jnp.transpose(w_ih), b_ih[None, :]
    ).reshape(s_pad, B, G)

    w_h = jnp.transpose(w_hh)   # (H, 3H)
    b_h = b_hh[None, :]         # (1, 3H)

    kernel = functools.partial(
        _gru_recurrent_kernel, hidden_dim=H, seq_chunk=T, unroll=(T <= 16)
    )

    out = pl.pallas_call(
        kernel,
        out_shape=jax.ShapeDtypeStruct((s_pad, B, H), jnp.float32),
        grid_spec=pltpu.PrefetchScalarGridSpec(
            num_scalar_prefetch=0,
            grid=(s_pad // T,),
            in_specs=[
                pl.BlockSpec((T, B, G), lambda c: (c, 0, 0)),
                pl.BlockSpec((H, G), lambda c: (0, 0)),
                pl.BlockSpec((1, G), lambda c: (0, 0)),
            ],
            out_specs=pl.BlockSpec((T, B, H), lambda c: (c, 0, 0)),
            scratch_shapes=[pltpu.VMEM((B, H), jnp.float32)],
        ),
        compiler_params=pltpu.CompilerParams(
            dimension_semantics=("arbitrary",),  # sequential recurrence over time chunks
        ),
    )(gates_x, w_h, b_h)

    return out[:S]


def init_gru_params(key, input_dim, hidden_dim, num_layers):
    """PyTorch nn.GRU parameter shapes: per layer weight_ih (3H, Din_l), weight_hh (3H, H),
    bias_ih (3H,), bias_hh (3H,), uniform(-1/sqrt(H), 1/sqrt(H))."""
    params = []
    bound = 1.0 / jnp.sqrt(jnp.float32(hidden_dim))
    for layer in range(num_layers):
        din = input_dim if layer == 0 else hidden_dim
        key, k1, k2, k3, k4 = jax.random.split(key, 5)
        w_ih = jax.random.uniform(k1, (3 * hidden_dim, din), jnp.float32, -bound, bound)
        w_hh = jax.random.uniform(k2, (3 * hidden_dim, hidden_dim), jnp.float32, -bound, bound)
        b_ih = jax.random.uniform(k3, (3 * hidden_dim,), jnp.float32, -bound, bound)
        b_hh = jax.random.uniform(k4, (3 * hidden_dim,), jnp.float32, -bound, bound)
        params.append((w_ih, w_hh, b_ih, b_hh))
    return params


def gru_feature_extractor(x, params, *, seq_chunk=8):
    """Forward pass of GRUFeatureExtractor.
    x: (seq_len, batch, input_dim) -> (seq_len, batch * hidden_dim)."""
    S, B, _ = x.shape
    b_pad = pl.cdiv(B, 8) * 8
    out = x.astype(jnp.float32)
    if b_pad != B:
        # Pad batch (sublane dim) to the native 8 sublanes; padded rows are sliced off below.
        out = jnp.pad(out, ((0, 0), (0, b_pad - B), (0, 0)))
    # TODO(synk): fuse all layers into a single pallas_call keeping the inter-layer
    # activations resident in VMEM (all layer weights fit trivially at these sizes).
    for (w_ih, w_hh, b_ih, b_hh) in params:
        out = gru_layer_pallas(out, w_ih, w_hh, b_ih, b_hh, seq_chunk=seq_chunk)
    return out[:, :B, :].reshape(S, -1)


# ---------------- pure-JAX reference (for correctness check) ----------------
def _gru_layer_ref(x, w_ih, w_hh, b_ih, b_hh):
    H = w_hh.shape[1]
    B = x.shape[1]

    def step(h, x_t):
        gi = x_t @ w_ih.T + b_ih
        gh = h @ w_hh.T + b_hh
        i_r, i_z, i_n = gi[:, :H], gi[:, H:2 * H], gi[:, 2 * H:]
        h_r, h_z, h_n = gh[:, :H], gh[:, H:2 * H], gh[:, 2 * H:]
        r = jax.nn.sigmoid(i_r + h_r)
        z = jax.nn.sigmoid(i_z + h_z)
        n = jnp.tanh(i_n + r * h_n)
        h_new = (1.0 - z) * n + z * h
        return h_new, h_new

    h0 = jnp.zeros((B, H), jnp.float32)
    _, out = jax.lax.scan(step, h0, x)
    return out


def gru_feature_extractor_ref(x, params):
    out = x
    for (w_ih, w_hh, b_ih, b_hh) in params:
        out = _gru_layer_ref(out, w_ih, w_hh, b_ih, b_hh)
    return out.reshape(out.shape[0], -1)


if __name__ == "__main__":
    # Small shapes consistent with the module: seq=8, batch=4, input_dim=16,
    # hidden_dim=32, num_layers=2.
    seq_len, batch, input_dim, hidden_dim, num_layers = 8, 4, 16, 32, 2

    key = jax.random.PRNGKey(0)
    key, kx = jax.random.split(key)
    x = jax.random.normal(kx, (seq_len, batch, input_dim), jnp.float32)
    params = init_gru_params(key, input_dim, hidden_dim, num_layers)

    out = gru_feature_extractor(x, params)
    out = jax.block_until_ready(out)

    ref = gru_feature_extractor_ref(x, params)
    assert out.shape == (seq_len, batch * hidden_dim), out.shape
    assert jnp.allclose(out, ref, atol=2e-5, rtol=2e-5), float(jnp.max(jnp.abs(out - ref)))

    print("KERNEL_OK")
</pallas_src>

<mosaic_0001>
module attributes {stable_mosaic.version = 11 : i64} {
  func.func @_input_proj_kernel(%arg0: i32, %arg1: memref<64x16xf32, #tpu.memory_space<vmem>>, %arg2: memref<16x96xf32, #tpu.memory_space<vmem>>, %arg3: memref<1x96xf32, #tpu.memory_space<vmem>>, %arg4: memref<64x96xf32, #tpu.memory_space<vmem>>) attributes {dimension_semantics = [#tpu.dimension_semantics<parallel>], iteration_bounds = array<i64: 1>, scalar_prefetch = 0 : i64, scratch_operands = 0 : i64, tpu.core_type = #tpu.core_type<tc>, window_params = [{transform_indices = @transform_0, window_bounds = array<i64: 64, 16>}, {pipeline_mode = #tpu.pipeline_mode<synchronous>, transform_indices = @transform_1, window_bounds = array<i64: 16, 96>}, {pipeline_mode = #tpu.pipeline_mode<synchronous>, transform_indices = @transform_2, window_bounds = array<i64: 1, 96>}, {transform_indices = @transform_3, window_bounds = array<i64: 64, 96>}]} {
    %c0 = arith.constant 0 : index
    %c0_0 = arith.constant 0 : index
    %0 = vector.load %arg1[%c0, %c0_0] : memref<64x16xf32, #tpu.memory_space<vmem>>, vector<64x16xf32>
    %c0_1 = arith.constant 0 : index
    %c0_2 = arith.constant 0 : index
    %1 = vector.load %arg2[%c0_1, %c0_2] : memref<16x96xf32, #tpu.memory_space<vmem>>, vector<16x96xf32>
    %cst = arith.constant dense<0.000000e+00> : vector<64x96xf32>
    %2 = tpu.matmul %0, %1, %cst {dimension_numbers = #tpu.dot_dimension_numbers<[1], [0], [0], [1], [0, 0, 1, 1], [], []>} : vector<64x16xf32>, vector<16x96xf32>, vector<64x96xf32> -> vector<64x96xf32>
    %c0_3 = arith.constant 0 : index
    %c0_4 = arith.constant 0 : index
    %3 = vector.load %arg3[%c0_3, %c0_4] : memref<1x96xf32, #tpu.memory_space<vmem>>, vector<1x96xf32>
    %4 = vector.broadcast %3 : vector<1x96xf32> to vector<64x96xf32>
    %5 = arith.addf %2, %4 : vector<64x96xf32>
    %c0_5 = arith.constant 0 : index
    %c0_6 = arith.constant 0 : index
    %6 = vector.load %arg4[%c0_5, %c0_6] : memref<64x96xf32, #tpu.memory_space<vmem>>, vector<64x96xf32>
    tpu.vector_store %arg4[%c0_5, %c0_6], %5 {strides = array<i32>} : memref<64x96xf32, #tpu.memory_space<vmem>>, vector<64x96xf32>,
    return
  }
  func.func @transform_0(%arg0: i32) -> (i32, i32) {
    %c0_i32 = arith.constant 0 : i32
    %c0_i32_0 = arith.constant 0 : i32
    return %arg0, %c0_i32 : i32, i32
  }
  func.func @transform_1(%arg0: i32) -> (i32, i32) {
    %c0_i32 = arith.constant 0 : i32
    %c0_i32_0 = arith.constant 0 : i32
    %c0_i32_1 = arith.constant 0 : i32
    return %c0_i32, %c0_i32_0 : i32, i32
  }
  func.func @transform_2(%arg0: i32) -> (i32, i32) {
    %c0_i32 = arith.constant 0 : i32
    %c0_i32_0 = arith.constant 0 : i32
    %c0_i32_1 = arith.constant 0 : i32
    return %c0_i32, %c0_i32_0 : i32, i32
  }
  func.func @transform_3(%arg0: i32) -> (i32, i32) {
    %c0_i32 = arith.constant 0 : i32
    %c0_i32_0 = arith.constant 0 : i32
    return %arg0, %c0_i32 : i32, i32
  }
}

</mosaic_0001>

<llo_original>
// kernel: tpu_custom_call.1
$region0: #{tpu_custom_call.1}
  #allocation0 [shape = 'u32[]', space=smem, size = 0x4, offset = 0x4, fixed_abs, tag = 'smem constant byte address 0x4 - core index']
  #allocation1 [shape = 'u32[144,128]{1,0:T(1,128)}', space=vmem, size = 0x12000, scoped, tag = 'internal scratch']
  %s0 = inlined_call_operand.vmem [shape: f32[64,16], index: 0, kind: input, shape index: {}]
  %s1 = inlined_call_operand.vmem [shape: f32[16,96], index: 1, kind: input, shape index: {}]
  %s2 = inlined_call_operand.vmem [shape: f32[1,96], index: 2, kind: input, shape index: {}]
  %s3 = inlined_call_operand.hbm [shape: f32[64,96], index: 3, kind: output, shape index: {}]
  %s4 = sld [smem:[#allocation0]]
  $region22: #{tpu_custom_call.1} parent=0
    _
  %s6 = ssub.s32 1, %s4
  %s7 = scalar_select 0, %s6, %s4
  $region1: #{tpu_custom_call.1} parent=0
    #allocation2 [shape = 'u8[32768]{0}', space=vmem, size = 0x8000, scoped, tag = 'output window, operand 0, single buffered']
    #allocation3 [shape = 's32[1]{0}', space=sflag, size = 0x4, scoped, tag = 'scoped memory for tpu_custom_call.1']
    %8 = vsyncpa [#allocation3], 0
    // Predicated region
    $region2: #{tpu_custom_call.1} parent=1 // pred_check
      _
    $region3: #{tpu_custom_call.1} parent=1 // pred_check_branch
      %10 = sbr.rel (0) target = $region5
    $region4: #{tpu_custom_call.1} parent=1 // pred_region
      _
    $region5: #{tpu_custom_call.1} parent=1 // pred_fallthru
      _
    // Predicated region
    $region6: #{tpu_custom_call.1} parent=1 // pred_check
      _
    $region7: #{tpu_custom_call.1} parent=1 // pred_check_branch
      %12 = sbr.rel (0) target = $region9
    $region8: #{tpu_custom_call.1} parent=1 // pred_region
      _
    $region9: #{tpu_custom_call.1} parent=1 // pred_fallthru
      _
    // Predicated region
    $region10: #{tpu_custom_call.1} parent=1 // pred_check
      _
    $region11: #{tpu_custom_call.1} parent=1 // pred_check_branch
      %14 = sbr.rel (0) target = $region13
    $region12: #{tpu_custom_call.1} parent=1 // pred_region
      _
    $region13: #{tpu_custom_call.1} parent=1 // pred_fallthru
      _
    %v15 = vld [vmem:[%s0] sm:$0xff]
    %v16 = vld [vmem:[%s0 + $0x8] sm:$0xff]
    %v17 = vld [vmem:[%s0 + $0x10] sm:$0xff]
    %v18 = vld [vmem:[%s0 + $0x18] sm:$0xff]
    %v19 = vld [vmem:[%s0 + $0x20] sm:$0xff]
    %v20 = vld [vmem:[%s0 + $0x28] sm:$0xff]
    %v21 = vld [vmem:[%s0 + $0x30] sm:$0xff]
    %v22 = vld [vmem:[%s0 + $0x38] sm:$0xff]
    %v23 = vld [vmem:[%s1] sm:$0xff]
    %v24 = vld [vmem:[%s1 + $0x8] sm:$0xff]
    %v25 = vld [vmem:[%s2] sm:$0x1]
    %v27 = vlaneseq
    %v28 = vshrl.u32 %v27, 7
    %v29 = vsub.s32 0, %v28
    %v30 = vrot.slane %v25, %v29
    %vm32 = vcmask 130048
    %v34 = vsel %vm32, %v15, 0
    %v37 = vsel %vm32, %v16, 0
    %v40 = vsel %vm32, %v17, 0
    %v43 = vsel %vm32, %v18, 0
    %v46 = vsel %vm32, %v19, 0
    %v49 = vsel %vm32, %v20, 0
    %v52 = vsel %vm32, %v21, 0
    %v55 = vsel %vm32, %v22, 0
    %57 = vmatprep.subr.mxu0 0.0
    %58 = vmatpush1.msra.mxu0 %v23
    %59 = vmatprep.subr.mxu0 0.0
    %60 = vmatpush1.msra.mxu0 %v24
    %61 = vmatprep.subr.mxu0 0.0
    %62 = vmatpush1.msra.mxu0 0.0
    %63 = vmatprep.subr.mxu0 0.0
    %64 = vmatpush1.msra.mxu0 0.0
    %65 = vmatprep.subr.mxu0 0.0
    %66 = vmatpush1.msra.mxu0 0.0
    %67 = vmatprep.subr.mxu0 0.0
    %68 = vmatpush1.msra.mxu0 0.0
    %69 = vmatprep.subr.mxu0 0.0
    %70 = vmatpush1.msra.mxu0 0.0
    %71 = vmatprep.subr.mxu0 0.0
    %72 = vmatpush1.msra.mxu0 0.0
    %73 = vmatprep.subr.mxu0 0.0
    %74 = vmatpush1.msra.mxu0 0.0
    %75 = vmatprep.subr.mxu0 0.0
    %76 = vmatpush1.msra.mxu0 0.0
    %77 = vmatprep.subr.mxu0 0.0
    %78 = vmatpush1.msra.mxu0 0.0
    %79 = vmatprep.subr.mxu0 0.0
    %80 = vmatpush1.msra.mxu0 0.0
    %81 = vmatprep.subr.mxu0 0.0
    %82 = vmatpush1.msra.mxu0 0.0
    %83 = vmatprep.subr.mxu0 0.0
    %84 = vmatpush1.msra.mxu0 0.0
    %85 = vmatprep.subr.mxu0 0.0
    %86 = vmatpush1.msra.mxu0 0.0
    %87 = vmatprep.subr.mxu0 0.0
    %88 = vmatpush1.msra.mxu0 0.0
    %89 = vmatprep.subr.mxu0 0.0
    %90 = vmatpush1.msra.mxu0 0.0
    %91 = vmatprep.subr.mxu0 0.0
    %92 = vmatpush1.msra.mxu0 0.0
    %93 = vmatprep.subr.mxu0 0.0
    %94 = vmatpush1.msra.mxu0 0.0
    %95 = vmatprep.subr.mxu0 0.0
    %96 = vmatpush1.msra.mxu0 0.0
    %97 = vmatprep.subr.mxu0 0.0
    %98 = vmatpush1.msra.mxu0 0.0
    %99 = vmatprep.subr.mxu0 0.0
    %100 = vmatpush1.msra.mxu0 0.0
    %101 = vmatprep.subr.mxu0 0.0
    %102 = vmatpush1.msra.mxu0 0.0
    %103 = vmatprep.subr.mxu0 0.0
    %104 = vmatpush1.msra.mxu0 0.0
    %105 = vmatprep.subr.mxu0 0.0
    %106 = vmatpush1.msra.mxu0 0.0
    %107 = vmatprep.subr.mxu0 0.0
    %108 = vmatpush1.msra.mxu0 0.0
    %109 = vmatprep.subr.mxu0 0.0
    %110 = vmatpush1.msra.mxu0 0.0
    %111 = vmatprep.subr.mxu0 0.0
    %112 = vmatpush1.msra.mxu0 0.0
    %113 = vmatprep.subr.mxu0 0.0
    %114 = vmatpush1.msra.mxu0 0.0
    %115 = vmatprep.subr.mxu0 0.0
    %116 = vmatpush1.msra.mxu0 0.0
    %117 = vmatprep.subr.mxu0 0.0
    %118 = vmatpush1.msra.mxu0 0.0
    %119 = vmatprep.subr.mxu0 0.0
    %120 = vmatpush1.msra.mxu0 0.0
    %121 = vmatprep.mubr.f32.mxu0 0.0
    %122 = vmatmul.mubr.f32.gmra.mrb[0].mxu0 %v34
    %v123 = vpop.f32.mrb[0].mxu0
    %v124 = vadd.f32 %v30, %v123
    %v125 = vpop.f32.mrb[0].mxu0
    %126 = vmatprep.mubr.f32.mxu0 0.0
    %127 = vmatmul.mubr.f32.gmra.mrb[0].mxu0 %v37
    %v128 = vpop.f32.mrb[0].mxu0
    %v129 = vadd.f32 %v30, %v128
    %v130 = vpop.f32.mrb[0].mxu0
    %131 = vmatprep.mubr.f32.mxu0 0.0
    %132 = vmatmul.mubr.f32.gmra.mrb[0].mxu0 %v40
    %v133 = vpop.f32.mrb[0].mxu0
    %v134 = vadd.f32 %v30, %v133
    %v135 = vpop.f32.mrb[0].mxu0
    %136 = vmatprep.mubr.f32.mxu0 0.0
    %137 = vmatmul.mubr.f32.gmra.mrb[0].mxu0 %v43
    %v138 = vpop.f32.mrb[0].mxu0
    %v139 = vadd.f32 %v30, %v138
    %v140 = vpop.f32.mrb[0].mxu0
    %141 = vmatprep.mubr.f32.mxu0 0.0
    %142 = vmatmul.mubr.f32.gmra.mrb[0].mxu0 %v46
    %v143 = vpop.f32.mrb[0].mxu0
    %v144 = vadd.f32 %v30, %v143
    %v145 = vpop.f32.mrb[0].mxu0
    %146 = vmatprep.mubr.f32.mxu0 0.0
    %147 = vmatmul.mubr.f32.gmra.mrb[0].mxu0 %v49
    %v148 = vpop.f32.mrb[0].mxu0
    %v149 = vadd.f32 %v30, %v148
    %v150 = vpop.f32.mrb[0].mxu0
    %151 = vmatprep.mubr.f32.mxu0 0.0
    %152 = vmatmul.mubr.f32.gmra.mrb[0].mxu0 %v52
    %v153 = vpop.f32.mrb[0].mxu0
    %v154 = vadd.f32 %v30, %v153
    %v155 = vpop.f32.mrb[0].mxu0
    %156 = vmatprep.mubr.f32.mxu0 0.0
    %157 = vmatmul.mubr.f32.gmra.mrb[0].mxu0 %v55
    %v158 = vpop.f32.mrb[0].mxu0
    %v159 = vadd.f32 %v30, %v158
    %v160 = vpop.f32.mrb[0].mxu0
    %161 = vdwg.mxu0
    %vm162 = vcmask 785408
    %163 = vst.msk [vmem:[#allocation2] sm:$0xff] %vm162, %v124
    %164 = vst.msk [vmem:[#allocation2 + $0x8] sm:$0xff] %vm162, %v129
    %165 = vst.msk [vmem:[#allocation2 + $0x10] sm:$0xff] %vm162, %v134
    %166 = vst.msk [vmem:[#allocation2 + $0x18] sm:$0xff] %vm162, %v139
    %167 = vst.msk [vmem:[#allocation2 + $0x20] sm:$0xff] %vm162, %v144
    %168 = vst.msk [vmem:[#allocation2 + $0x28] sm:$0xff] %vm162, %v149
    %169 = vst.msk [vmem:[#allocation2 + $0x30] sm:$0xff] %vm162, %v154
    %170 = vst.msk [vmem:[#allocation2 + $0x38] sm:$0xff] %vm162, %v159
    // Predicated region
    $region14: #{tpu_custom_call.1} parent=1 // pred_check
      _
    $region15: #{tpu_custom_call.1} parent=1 // pred_check_branch
      %172 = sbr.rel (0) target = $region17
    $region16: #{tpu_custom_call.1} parent=1 // pred_region
      %s174 = ssub.s32 1024, 1024
      %175 = vsyncadd [#allocation3], %s174
      %s176 = sshll.u32 [#allocation2], 4
      %s177 = int_to_ptr.vmem [resolvable:$true] %s176
      %182 = dma.vmem_to_hbm [thread:$0]  %s177, 1024, %s3, [#allocation3], 128, 128, 8
    $region17: #{tpu_custom_call.1} parent=1 // pred_fallthru
      _
    // Predicated region
    $region18: #{tpu_custom_call.1} parent=1 // pred_check
      _
    $region19: #{tpu_custom_call.1} parent=1 // pred_check_branch
      %184 = sbr.rel (0) target = $region21
    $region20: #{tpu_custom_call.1} parent=1 // pred_region
      %185 = dma.done [#allocation3], 1024
    $region21: #{tpu_custom_call.1} parent=1 // pred_fallthru
      _
    %186 = vsyncpa [#allocation3], 1

</llo_original>
